<compile_context>
chip_gen: v7x
topology: tpu7x:2x2x1
jax: 0.10.0
libtpu: 0.0.40
codegen_flags: <defaults>
</compile_context>

<pallas_src>
from typing import NamedTuple

import jax
import jax.numpy as jnp
from jax import lax
from jax.experimental import pallas as pl
from jax.experimental.pallas import tpu as pltpu


def _round_up(x, m):
    return ((x + m - 1) // m) * m


def _cdiv(a, b):
    return -(-a // b)


# --------------------------------------------------------------------------- #
# Kernel
# --------------------------------------------------------------------------- #
def _rbm_forward_kernel(scale_ref, v_ref, w_ref, c_ref, o_ref):
    # (TM, Vp) . (TN, Vp)^T contracted on Vp -> (TM, TN); f32 accumulation on MXU.
    logits = lax.dot_general(
        v_ref[...], w_ref[...],
        dimension_numbers=(((1,), (1,)), ((), ())),
        preferred_element_type=jnp.float32,
    )
    x = (logits + c_ref[...]) * scale_ref[0, 0]
    # sigmoid(x) = 0.5 * tanh(0.5 * x) + 0.5  -> a single EUP transcendental.
    o_ref[...] = (0.5 * jnp.tanh(0.5 * x) + 0.5).astype(o_ref.dtype)


# --------------------------------------------------------------------------- #
# One-time parameter preparation (do NOT redo this per forward call)
# --------------------------------------------------------------------------- #
class RBMParams(NamedTuple):
    w_pad: jax.Array   # (Hp, Vp) compute_dtype
    c_pad: jax.Array   # (1, Hp)  float32
    H: int
    V: int
    Hp: int
    Vp: int
    TN: int


def prepare_rbm_params(W, c, compute_dtype=jnp.bfloat16, block_h=256):
    """Pad/cast the RBM parameters once, ready for `rbm_forward`."""
    H, V = W.shape
    assert c.shape == (H,)
    lane_k = 256 if jnp.dtype(compute_dtype).itemsize < 4 else 128
    Vp = _round_up(V, lane_k)                      # lane-dense contraction dim
    TN = min(block_h, _round_up(H, 128))           # hidden tile, multiple of 128
    Hp = _round_up(H, TN)                          # padded hidden dim

    w_pad = jnp.zeros((Hp, Vp), compute_dtype).at[:H, :V].set(
        W.astype(compute_dtype))
    c_pad = jnp.zeros((1, Hp), jnp.float32).at[0, :H].set(
        c.astype(jnp.float32))
    return RBMParams(w_pad, c_pad, H, V, Hp, Vp, TN)


# --------------------------------------------------------------------------- #
# Forward wrapper
# --------------------------------------------------------------------------- #
def rbm_forward(visible, params: RBMParams, scale=1.0,
                block_b=256, out_dtype=None):
    """P(H) = sigmoid((visible @ W.T + c) * scale)   [BINARY vartype]."""
    B, V = visible.shape
    assert V == params.V
    compute_dtype = params.w_pad.dtype
    out_dtype = out_dtype or visible.dtype
    Hp, Vp, TN = params.Hp, params.Vp, params.TN

    # Batch tile: bf16 packs 16 sublanes/vreg; avoid ~2x over-padding for
    # batch sizes just above block_b by splitting B as evenly as possible.
    sub = 16 if jnp.dtype(compute_dtype).itemsize == 2 else 8
    n_b = _cdiv(B, block_b)
    TM = min(_round_up(_cdiv(B, n_b), sub), _round_up(B, sub))
    Bp = _round_up(B, TM)

    # Only the activations are padded per call (parameters were prepped once).
    if (Bp, Vp) != (B, V) or visible.dtype != compute_dtype:
        v_in = jnp.pad(visible.astype(compute_dtype),
                       ((0, Bp - B), (0, Vp - V)))
    else:
        v_in = visible

    scale_arr = jnp.full((1, 1), scale, jnp.float32)

    grid = (Hp // TN, Bp // TM)   # hidden OUTER: each W tile DMA'd once

    # Explicit scoped-VMEM budget from the tile footprint (double-buffered),
    # capped below v7x's 64 MiB physical VMEM.
    elem = jnp.dtype(compute_dtype).itemsize
    out_elem = jnp.dtype(out_dtype).itemsize
    vmem_est = 2 * ((TM + TN) * Vp * elem + TN * 4 + TM * TN * out_elem)
    vmem_limit = int(min(max(2 * vmem_est, 16 * 1024 * 1024),
                         48 * 1024 * 1024))

    out = pl.pallas_call(
        _rbm_forward_kernel,
        out_shape=jax.ShapeDtypeStruct((Bp, Hp), out_dtype),
        grid=grid,
        in_specs=[
            pl.BlockSpec(memory_space=pltpu.MemorySpace.SMEM),   # scale (1,1)
            pl.BlockSpec((TM, Vp), lambda j, i: (i, 0)),         # visible rows
            pl.BlockSpec((TN, Vp), lambda j, i: (j, 0)),         # W hidden tile
            pl.BlockSpec((1, TN), lambda j, i: (0, j)),          # hidden bias
        ],
        out_specs=pl.BlockSpec((TM, TN), lambda j, i: (i, j)),
        compiler_params=pltpu.CompilerParams(
            dimension_semantics=("parallel", "parallel"),
            vmem_limit_bytes=vmem_limit,
        ),
    )(scale_arr, v_in, params.w_pad, params.c_pad)

    return out[:B, :params.H]


# --------------------------------------------------------------------------- #
# Self-test
# --------------------------------------------------------------------------- #
if __name__ == "__main__":
    # RBM sizes (visible V, hidden H), small batch.
    V, H, B = 64, 32, 8
    lin_lo, lin_hi = -0.1, 0.1
    quad_lo, quad_hi = -0.1, 0.1

    key = jax.random.PRNGKey(0)
    kb, kc, kw, kv = jax.random.split(key, 4)

    # Deterministic init mirroring the module's Uniform(-0.1, 0.1).
    b = jax.random.uniform(kb, (V,), jnp.float32, lin_lo, lin_hi)   # visible bias (unused in forward)
    c = jax.random.uniform(kc, (H,), jnp.float32, lin_lo, lin_hi)   # hidden bias
    W = jax.random.uniform(kw, (H, V), jnp.float32, quad_lo, quad_hi)

    # Binary visible units in {0, 1}.
    visible = (jax.random.uniform(kv, (B, V), jnp.float32) > 0.5).astype(jnp.float32)

    # Pure-JAX references.
    ref1 = jax.nn.sigmoid((visible @ W.T + c) * 1.0)
    ref_half = jax.nn.sigmoid((visible @ W.T + c) * 0.5)

    # f32 compute path: tight tolerance against the reference.
    params_f32 = prepare_rbm_params(W, c, compute_dtype=jnp.float32)
    out_f32 = jax.block_until_ready(rbm_forward(visible, params_f32, scale=1.0))
    assert out_f32.shape == (B, H)
    assert jnp.allclose(out_f32, ref1, atol=1e-5, rtol=1e-5)

    # Same compiled kernel, different runtime scale (SMEM operand, no recompile).
    out_half = jax.block_until_ready(rbm_forward(visible, params_f32, scale=0.5))
    assert jnp.allclose(out_half, ref_half, atol=1e-5, rtol=1e-5)

    # Default bf16 MXU path (fast on v6e/v7x): f32 accumulation, looser tolerance
    # (deliberate deviation: W quantized to bf16 relative to the f32 module).
    params_bf16 = prepare_rbm_params(W, c)   # compute_dtype=bf16
    out_bf16 = jax.block_until_ready(rbm_forward(visible, params_bf16, scale=1.0))
    assert out_bf16.shape == (B, H)
    assert jnp.allclose(out_bf16, ref1, atol=2e-2, rtol=2e-2)

    print("KERNEL_OK")
</pallas_src>

<mosaic_0001>
module attributes {stable_mosaic.version = 11 : i64} {
  func.func @_rbm_forward_kernel(%arg0: i32, %arg1: i32, %arg2: memref<1x1xf32, #tpu.memory_space<smem>>, %arg3: memref<8x128xf32, #tpu.memory_space<vmem>>, %arg4: memref<128x128xf32, #tpu.memory_space<vmem>>, %arg5: memref<1x128xf32, #tpu.memory_space<vmem>>, %arg6: memref<8x128xf32, #tpu.memory_space<vmem>>) attributes {dimension_semantics = [#tpu.dimension_semantics<parallel>, #tpu.dimension_semantics<parallel>], iteration_bounds = array<i64: 1, 1>, scalar_prefetch = 0 : i64, scratch_operands = 0 : i64, tpu.core_type = #tpu.core_type<tc>, window_params = [{transform_indices = @transform_0, window_bounds = array<i64: 1, 1>}, {transform_indices = @transform_1, window_bounds = array<i64: 8, 128>}, {transform_indices = @transform_2, window_bounds = array<i64: 128, 128>}, {transform_indices = @transform_3, window_bounds = array<i64: 1, 128>}, {transform_indices = @transform_4, window_bounds = array<i64: 8, 128>}]} {
    %c0 = arith.constant 0 : index
    %c0_0 = arith.constant 0 : index
    %0 = vector.load %arg3[%c0, %c0_0] : memref<8x128xf32, #tpu.memory_space<vmem>>, vector<8x128xf32>
    %c0_1 = arith.constant 0 : index
    %c0_2 = arith.constant 0 : index
    %1 = vector.load %arg4[%c0_1, %c0_2] : memref<128x128xf32, #tpu.memory_space<vmem>>, vector<128x128xf32>
    %cst = arith.constant dense<0.000000e+00> : vector<8x128xf32>
    %2 = tpu.matmul %0, %1, %cst {dimension_numbers = #tpu.dot_dimension_numbers<[1], [1], [0], [0], [0, 0, 1, 0], [], []>} : vector<8x128xf32>, vector<128x128xf32>, vector<8x128xf32> -> vector<8x128xf32>
    %c0_3 = arith.constant 0 : index
    %c0_4 = arith.constant 0 : index
    %3 = vector.load %arg5[%c0_3, %c0_4] : memref<1x128xf32, #tpu.memory_space<vmem>>, vector<1x128xf32>
    %4 = vector.broadcast %3 : vector<1x128xf32> to vector<8x128xf32>
    %5 = arith.addf %2, %4 : vector<8x128xf32>
    %c0_5 = arith.constant 0 : index
    %c0_6 = arith.constant 0 : index
    %6 = memref.load %arg2[%c0_5, %c0_6] : memref<1x1xf32, #tpu.memory_space<smem>>
    %7 = vector.broadcast %6 : f32 to vector<8x128xf32>
    %8 = arith.mulf %5, %7 : vector<8x128xf32>
    %cst_7 = arith.constant 5.000000e-01 : f32
    %9 = vector.broadcast %cst_7 : f32 to vector<8x128xf32>
    %10 = arith.mulf %9, %8 : vector<8x128xf32>
    %11 = math.tanh %10 : vector<8x128xf32>
    %cst_8 = arith.constant 5.000000e-01 : f32
    %12 = vector.broadcast %cst_8 : f32 to vector<8x128xf32>
    %13 = arith.mulf %12, %11 : vector<8x128xf32>
    %cst_9 = arith.constant 5.000000e-01 : f32
    %14 = vector.broadcast %cst_9 : f32 to vector<8x128xf32>
    %15 = arith.addf %13, %14 : vector<8x128xf32>
    %c0_10 = arith.constant 0 : index
    %c0_11 = arith.constant 0 : index
    %16 = vector.load %arg6[%c0_10, %c0_11] : memref<8x128xf32, #tpu.memory_space<vmem>>, vector<8x128xf32>
    tpu.vector_store %arg6[%c0_10, %c0_11], %15 {strides = array<i32>} : memref<8x128xf32, #tpu.memory_space<vmem>>, vector<8x128xf32>,
    return
  }
  func.func @transform_0(%arg0: i32, %arg1: i32) -> (i32, i32) {
    %c0_i32 = arith.constant 0 : i32
    %c0_i32_0 = arith.constant 0 : i32
    %c0_i32_1 = arith.constant 0 : i32
    return %c0_i32, %c0_i32_0 : i32, i32
  }
  func.func @transform_1(%arg0: i32, %arg1: i32) -> (i32, i32) {
    %c0_i32 = arith.constant 0 : i32
    %c0_i32_0 = arith.constant 0 : i32
    return %arg1, %c0_i32 : i32, i32
  }
  func.func @transform_2(%arg0: i32, %arg1: i32) -> (i32, i32) {
    %c0_i32 = arith.constant 0 : i32
    %c0_i32_0 = arith.constant 0 : i32
    return %arg0, %c0_i32 : i32, i32
  }
  func.func @transform_3(%arg0: i32, %arg1: i32) -> (i32, i32) {
    %c0_i32 = arith.constant 0 : i32
    %c0_i32_0 = arith.constant 0 : i32
    return %c0_i32, %arg0 : i32, i32
  }
  func.func @transform_4(%arg0: i32, %arg1: i32) -> (i32, i32) {
    %c0_i32 = arith.constant 0 : i32
    return %arg1, %arg0 : i32, i32
  }
}

</mosaic_0001>

<llo_original>
// kernel: tpu_custom_call.1
$region0: #{tpu_custom_call.1}
  #allocation0 [shape = 'u32[]', space=smem, size = 0x4, offset = 0x4, fixed_abs, tag = 'smem constant byte address 0x4 - core index']
  #allocation1 [shape = 'u32[144,128]{1,0:T(1,128)}', space=vmem, size = 0x12000, scoped, tag = 'internal scratch']
  #allocation2 [shape = 'f32[1,1]{1,0:T(1,128)S(6)}', space=smem, size = 0x200, scoped, tag = 'scoped memory for tpu_custom_call.1']
  %s0 = inlined_call_operand.<no memory space> [shape: f32[1,1], index: 0, kind: input, shape index: {}]
  %s1 = inlined_call_operand.hbm [shape: f32[8,128], index: 1, kind: input, shape index: {}]
  %s2 = inlined_call_operand.hbm [shape: f32[128,128], index: 2, kind: input, shape index: {}]
  %s3 = inlined_call_operand.vmem [shape: f32[1,128], index: 3, kind: input, shape index: {}]
  %s4 = inlined_call_operand.hbm [shape: f32[8,128], index: 4, kind: output, shape index: {}]
  %s5 = sld [smem:[#allocation0]]
  $region34: #{tpu_custom_call.1} parent=0
    _
  %s7 = ssub.s32 1, %s5
  %s8 = scalar_select 0, %s7, %s5
  %9 = sst [smem:[#allocation2]] %s0
  $region1: #{tpu_custom_call.1} parent=0
    #allocation3 [shape = 'u8[4096]{0}', space=vmem, size = 0x1000, scoped, tag = 'input window, operand 1, single buffered']
    #allocation4 [shape = 's32[1]{0}', space=sflag, size = 0x4, scoped, tag = 'scoped memory for tpu_custom_call.1']
    #allocation5 [shape = 's32[1]{0}', space=sflag, size = 0x4, scoped, tag = 'scoped memory for tpu_custom_call.1']
    #allocation6 [shape = 'u8[65536]{0}', space=vmem, size = 0x10000, scoped, tag = 'input window, operand 2, single buffered']
    #allocation7 [shape = 's32[1]{0}', space=sflag, size = 0x4, scoped, tag = 'scoped memory for tpu_custom_call.1']
    #allocation8 [shape = 'u8[4096]{0}', space=vmem, size = 0x1000, scoped, tag = 'output window, operand 0, single buffered']
    %10 = vsyncpa [#allocation4], 0
    %11 = vsyncpa [#allocation7], 0
    %12 = vsyncpa [#allocation5], 0
    // Predicated region
    $region2: #{tpu_custom_call.1} parent=1 // pred_check
      _
    $region3: #{tpu_custom_call.1} parent=1 // pred_check_branch
      %14 = sbr.rel (0) target = $region5
    $region4: #{tpu_custom_call.1} parent=1 // pred_region
      _
    $region5: #{tpu_custom_call.1} parent=1 // pred_fallthru
      _
    // Predicated region
    $region6: #{tpu_custom_call.1} parent=1 // pred_check
      _
    $region7: #{tpu_custom_call.1} parent=1 // pred_check_branch
      %16 = sbr.rel (0) target = $region9
    $region8: #{tpu_custom_call.1} parent=1 // pred_region
      %s18 = ssub.s32 128, 128
      %19 = vsyncadd [#allocation4], %s18
      %s21 = sshll.u32 [#allocation3], 4
      %s22 = int_to_ptr.vmem [resolvable:$true] %s21
      %24 = dma.hbm_to_vmem [thread:$0]  %s1, 128, %s22, [#allocation4]
    $region9: #{tpu_custom_call.1} parent=1 // pred_fallthru
      _
    // Predicated region
    $region10: #{tpu_custom_call.1} parent=1 // pred_check
      _
    $region11: #{tpu_custom_call.1} parent=1 // pred_check_branch
      %26 = sbr.rel (0) target = $region13
    $region12: #{tpu_custom_call.1} parent=1 // pred_region
      %s28 = ssub.s32 2048, 2048
      %29 = vsyncadd [#allocation7], %s28
      %s30 = sshll.u32 [#allocation6], 4
      %s31 = int_to_ptr.vmem [resolvable:$true] %s30
      %36 = dma.hbm_to_vmem [thread:$0]  %s2, 2048, %s31, [#allocation7], 128, 128, 8
    $region13: #{tpu_custom_call.1} parent=1 // pred_fallthru
      _
    // Predicated region
    $region14: #{tpu_custom_call.1} parent=1 // pred_check
      _
    $region15: #{tpu_custom_call.1} parent=1 // pred_check_branch
      %38 = sbr.rel (0) target = $region17
    $region16: #{tpu_custom_call.1} parent=1 // pred_region
      _
    $region17: #{tpu_custom_call.1} parent=1 // pred_fallthru
      _
    // Predicated region
    $region18: #{tpu_custom_call.1} parent=1 // pred_check
      _
    $region19: #{tpu_custom_call.1} parent=1 // pred_check_branch
      %40 = sbr.rel (0) target = $region21
    $region20: #{tpu_custom_call.1} parent=1 // pred_region
      %41 = dma.done [#allocation4], 128
    $region21: #{tpu_custom_call.1} parent=1 // pred_fallthru
      _
    // Predicated region
    $region22: #{tpu_custom_call.1} parent=1 // pred_check
      _
    $region23: #{tpu_custom_call.1} parent=1 // pred_check_branch
      %43 = sbr.rel (0) target = $region25
    $region24: #{tpu_custom_call.1} parent=1 // pred_region
      %44 = dma.done [#allocation7], 2048
    $region25: #{tpu_custom_call.1} parent=1 // pred_fallthru
      _
    %v45 = vld [vmem:[#allocation3] sm:$0xff]
    %v46 = vld [vmem:[#allocation6] sm:$0xff]
    %v47 = vld [vmem:[#allocation6 + $0x8] sm:$0xff]
    %v48 = vld [vmem:[#allocation6 + $0x10] sm:$0xff]
    %v49 = vld [vmem:[#allocation6 + $0x18] sm:$0xff]
    %v50 = vld [vmem:[#allocation6 + $0x20] sm:$0xff]
    %v51 = vld [vmem:[#allocation6 + $0x28] sm:$0xff]
    %v52 = vld [vmem:[#allocation6 + $0x30] sm:$0xff]
    %v53 = vld [vmem:[#allocation6 + $0x38] sm:$0xff]
    %v54 = vld [vmem:[#allocation6 + $0x40] sm:$0xff]
    %v55 = vld [vmem:[#allocation6 + $0x48] sm:$0xff]
    %v56 = vld [vmem:[#allocation6 + $0x50] sm:$0xff]
    %v57 = vld [vmem:[#allocation6 + $0x58] sm:$0xff]
    %v58 = vld [vmem:[#allocation6 + $0x60] sm:$0xff]
    %v59 = vld [vmem:[#allocation6 + $0x68] sm:$0xff]
    %v60 = vld [vmem:[#allocation6 + $0x70] sm:$0xff]
    %v61 = vld [vmem:[#allocation6 + $0x78] sm:$0xff]
    %v62 = vld [vmem:[%s3] sm:$0x1]
    %v64 = vlaneseq
    %v65 = vshrl.u32 %v64, 7
    %v66 = vsub.s32 0, %v65
    %v67 = vrot.slane %v62, %v66
    %69 = vmatprep.subr.mxu0 0.0
    %70 = vmatpush1.xpose.msra.mxu0 %v46
    %71 = vmatprep.subr.mxu0 0.0
    %72 = vmatpush1.xpose.msra.mxu0 %v47
    %73 = vmatprep.subr.mxu0 0.0
    %74 = vmatpush1.xpose.msra.mxu0 %v48
    %75 = vmatprep.subr.mxu0 0.0
    %76 = vmatpush1.xpose.msra.mxu0 %v49
    %77 = vmatprep.subr.mxu0 0.0
    %78 = vmatpush1.xpose.msra.mxu0 %v50
    %79 = vmatprep.subr.mxu0 0.0
    %80 = vmatpush1.xpose.msra.mxu0 %v51
    %81 = vmatprep.subr.mxu0 0.0
    %82 = vmatpush1.xpose.msra.mxu0 %v52
    %83 = vmatprep.subr.mxu0 0.0
    %84 = vmatpush1.xpose.msra.mxu0 %v53
    %85 = vmatprep.subr.mxu0 0.0
    %86 = vmatpush1.xpose.msra.mxu0 %v54
    %87 = vmatprep.subr.mxu0 0.0
    %88 = vmatpush1.xpose.msra.mxu0 %v55
    %89 = vmatprep.subr.mxu0 0.0
    %90 = vmatpush1.xpose.msra.mxu0 %v56
    %91 = vmatprep.subr.mxu0 0.0
    %92 = vmatpush1.xpose.msra.mxu0 %v57
    %93 = vmatprep.subr.mxu0 0.0
    %94 = vmatpush1.xpose.msra.mxu0 %v58
    %95 = vmatprep.subr.mxu0 0.0
    %96 = vmatpush1.xpose.msra.mxu0 %v59
    %97 = vmatprep.subr.mxu0 0.0
    %98 = vmatpush1.xpose.msra.mxu0 %v60
    %99 = vmatprep.subr.mxu0 0.0
    %100 = vmatpush1.xpose.msra.mxu0 %v61
    %101 = vmatprep.subr.mxu0 0.0
    %102 = vmatpush1.xpose.msra.mxu0 0.0
    %103 = vmatprep.subr.mxu0 0.0
    %104 = vmatpush1.xpose.msra.mxu0 0.0
    %105 = vmatprep.subr.mxu0 0.0
    %106 = vmatpush1.xpose.msra.mxu0 0.0
    %107 = vmatprep.subr.mxu0 0.0
    %108 = vmatpush1.xpose.msra.mxu0 0.0
    %109 = vmatprep.subr.mxu0 0.0
    %110 = vmatpush1.xpose.msra.mxu0 0.0
    %111 = vmatprep.subr.mxu0 0.0
    %112 = vmatpush1.xpose.msra.mxu0 0.0
    %113 = vmatprep.subr.mxu0 0.0
    %114 = vmatpush1.xpose.msra.mxu0 0.0
    %115 = vmatprep.subr.mxu0 0.0
    %116 = vmatpush1.xpose.msra.mxu0 0.0
    %117 = vmatprep.subr.mxu0 0.0
    %118 = vmatpush1.xpose.msra.mxu0 0.0
    %119 = vmatprep.subr.mxu0 0.0
    %120 = vmatpush1.xpose.msra.mxu0 0.0
    %121 = vmatprep.subr.mxu0 0.0
    %122 = vmatpush1.xpose.msra.mxu0 0.0
    %123 = vmatprep.subr.mxu0 0.0
    %124 = vmatpush1.xpose.msra.mxu0 0.0
    %125 = vmatprep.subr.mxu0 0.0
    %126 = vmatpush1.xpose.msra.mxu0 0.0
    %127 = vmatprep.subr.mxu0 0.0
    %128 = vmatpush1.xpose.msra.mxu0 0.0
    %129 = vmatprep.subr.mxu0 0.0
    %130 = vmatpush1.xpose.msra.mxu0 0.0
    %131 = vmatprep.subr.mxu0 0.0
    %132 = vmatpush1.xpose.msra.mxu0 0.0
    %133 = vmatprep.mubr.f32.mxu0 0.0
    %134 = vmatmul.mubr.f32.gmra.mrb[0].mxu0 %v45
    %v135 = vpop.f32.mrb[0].mxu0
    %v136 = vadd.f32 %v67, %v135
    %v137 = vpop.f32.mrb[0].mxu0
    %138 = vdwg.mxu0
    %s139 = sld [smem:[#allocation2]]
    %v140 = vstv %s139
    %v141 = vmul.f32 %v136, %v140
    %v142 = vmul.f32 %v141, 0.5
    %v143 = vtanh.pop %v142
    %v144 = vmul.f32 %v143, 0.5
    %v145 = vadd.f32 %v144, 0.5
    %146 = vst [vmem:[#allocation8] sm:$0xff] %v145
    // Predicated region
    $region26: #{tpu_custom_call.1} parent=1 // pred_check
      _
    $region27: #{tpu_custom_call.1} parent=1 // pred_check_branch
      %148 = sbr.rel (0) target = $region29
    $region28: #{tpu_custom_call.1} parent=1 // pred_region
      %s150 = ssub.s32 128, 128
      %151 = vsyncadd [#allocation5], %s150
      %s153 = sshll.u32 [#allocation8], 4
      %s154 = int_to_ptr.vmem [resolvable:$true] %s153
      %156 = dma.vmem_to_hbm [thread:$0]  %s154, 128, %s4, [#allocation5]
    $region29: #{tpu_custom_call.1} parent=1 // pred_fallthru
      _
    // Predicated region
    $region30: #{tpu_custom_call.1} parent=1 // pred_check
      _
    $region31: #{tpu_custom_call.1} parent=1 // pred_check_branch
      %158 = sbr.rel (0) target = $region33
    $region32: #{tpu_custom_call.1} parent=1 // pred_region
      %159 = dma.done [#allocation5], 128
    $region33: #{tpu_custom_call.1} parent=1 // pred_fallthru
      _
    %160 = vsyncpa [#allocation4], 1
    %161 = vsyncpa [#allocation7], 1
    %162 = vsyncpa [#allocation5], 1

</llo_original>
